<compile_context>
chip_gen: v7x
topology: tpu7x:2x2x1
jax: 0.10.0
libtpu: 0.0.40
codegen_flags: <defaults>
</compile_context>

<pallas_src>
import functools
import math

import jax
import jax.numpy as jnp
from jax.experimental import pallas as pl
from jax.experimental.pallas import tpu as pltpu


def _as(a, dt):
    return a if a.dtype == jnp.dtype(dt) else a.astype(dt)


# ---------------------------------------------------------------------------
# Kernel
# ---------------------------------------------------------------------------
def att_flatten_kernel(x_ref, maskb_ref, w1_ref, b1_ref, w2_ref, wm_ref, bm_ref,
                       out_ref):
    """One batch tile of AttFlatten (eval mode), flat_glimpses == 1."""
    TB, S, H = x_ref.shape

    x = x_ref[...]                       # (TB, S, H) compute dtype (bf16 default)
    mask_bias = maskb_ref[...]           # (TB, S) f32: b2 at valid, b2 - 1e9 at pad

    # --- MLP: Linear(H->D) -> ReLU -> [dropout 0.1: eval no-op] -> Linear(D->1)
    # All TB*S rows go through a single MXU matmul.
    # TODO(synk): training-mode dropout(p=0.1) not implemented (eval semantics).
    h = jnp.dot(x.reshape(TB * S, H), w1_ref[...],
                preferred_element_type=jnp.float32) + b1_ref[...]
    h = jnp.maximum(h, 0.0)
    att_col = jnp.dot(h.astype(w2_ref.dtype), w2_ref[...],
                      preferred_element_type=jnp.float32)           # (TB*S, 1)

    # --- lane-dense logits: (TB, S) with S on lanes.  b2 and the additive
    # -1e9 padding mask are pre-folded into mask_bias by the wrapper.
    att = att_col.reshape(TB, S, 1)[:, :, 0] + mask_bias            # (TB, S) f32

    # --- softmax over the sequence (lane) axis ---
    att = att - jnp.max(att, axis=-1, keepdims=True)
    e = jnp.exp(att)
    denom = jnp.sum(e, axis=-1, keepdims=True)
    p = e * pl.reciprocal(denom, approx=True)                       # (TB, S) f32

    # --- glimpse pooling (flat_glimpses == 1) as a batched MXU matmul:
    # (TB,1,S) @ (TB,S,H) -> (TB,1,H); p is already lane-dense for the lhs.
    pooled = jnp.einsum("tgs,tsh->tgh",
                        p.reshape(TB, 1, S).astype(x.dtype), x,
                        preferred_element_type=jnp.float32).reshape(TB, H)

    # --- fused linear_merge: (TB, H) @ (H, H) + b, with M = TB ---
    out = jnp.dot(pooled.astype(wm_ref.dtype), wm_ref[...],
                  preferred_element_type=jnp.float32) + bm_ref[...]
    out_ref[...] = out.astype(out_ref.dtype)


# ---------------------------------------------------------------------------
# Hardware probes / tiling heuristics
# ---------------------------------------------------------------------------
def _vmem_capacity_bytes():
    try:
        return int(pltpu.get_tpu_info().vmem_capacity_bytes)
    except Exception:
        return 64 * 1024 * 1024          # conservative (v7x per-TensorCore VMEM)


@functools.lru_cache(maxsize=None)
def _single_buffer_weights_ok():
    """Probe whether pipeline_mode=pl.Buffered(1) lowers & runs on this backend."""
    try:
        def _copy(x_ref, o_ref):
            o_ref[...] = x_ref[...]

        with jax.ensure_compile_time_eval():
            src = jnp.arange(8 * 128, dtype=jnp.float32).reshape(8, 128)
            out = pl.pallas_call(
                _copy,
                out_shape=jax.ShapeDtypeStruct((16, 128), jnp.float32),
                grid=(2,),
                in_specs=[pl.BlockSpec((8, 128), lambda i: (0, 0),
                                       pipeline_mode=pl.Buffered(1))],
                out_specs=pl.BlockSpec((8, 128), lambda i: (i, 0)),
            )(src)
            out = jax.block_until_ready(out)
            return bool(jnp.allclose(out, jnp.concatenate([src, src], axis=0)))
    except Exception:
        return False


def _tile_config(B, S, H, D, cd_size, out_size, block_b):
    vmem_cap = _vmem_capacity_bytes()
    big_vmem = vmem_cap >= 96 * 1024 * 1024       # v5e / v6e: 128 MiB per core
    two_core = not big_vmem                       # v7x: 64 MiB per core, 2 TCs
    vmem_limit = (64 if big_vmem else 48) * 1024 * 1024

    if block_b is not None:
        return int(block_b), vmem_limit, two_core

    # Working-set budget counts the double-buffered x/mask/out tiles AND the
    # in-kernel f32 intermediates (h is TB*S*D*4 and dominates when D > H), so
    # a TB that fits v6e also fits v7x's smaller VMEM.
    budget = (28 if big_vmem else 18) * 1024 * 1024
    wbuf = 1 if _single_buffer_weights_ok() else 2
    weight_bytes = wbuf * ((H * D + D + H * H) * cd_size + (D + 1 + H) * 4)
    row_bytes = (2 * S * H * cd_size          # x tile (double buffered)
                 + 2 * S * 4                  # mask/bias tile (double buffered)
                 + 2 * H * out_size           # output tile (double buffered)
                 + S * D * (4 + cd_size)      # h in f32 + cast for 2nd matmul
                 + 6 * S * 4                  # logits / exp / probs (+ cast)
                 + 8 * H)                     # pooled + merge accumulators
    tb = (budget - weight_bytes) // max(1, row_bytes)
    return int(max(8, min(512, tb))), vmem_limit, two_core


# ---------------------------------------------------------------------------
# Wrapper
# ---------------------------------------------------------------------------
def prepare_params(params, compute_dtype=jnp.bfloat16):
    """Pre-cast weights to the kernel compute dtype once (outside the hot path)."""
    cd = jnp.dtype(compute_dtype)
    return {
        "w1": _as(jnp.asarray(params["w1"]), cd),
        "w2": _as(jnp.asarray(params["w2"]), cd),
        "wm": _as(jnp.asarray(params["wm"]), cd),
        "b1": _as(jnp.asarray(params["b1"]), jnp.float32),
        "b2": _as(jnp.asarray(params["b2"]), jnp.float32),
        "bm": _as(jnp.asarray(params["bm"]), jnp.float32),
    }


def att_flatten(x, x_mask, params, *, flat_glimpses=1, block_b=None,
                compute_dtype=jnp.bfloat16):
    """x: (B, S, H), x_mask: (B, S) bool (True = padded). Returns (B, H)."""
    if flat_glimpses != 1:
        raise NotImplementedError(
            "AttFlatten's MLP has out_size == 1, so flat_glimpses must be 1.")
    B, S, H = x.shape
    D = params["w1"].shape[1]
    out_dtype = x.dtype
    cd = jnp.dtype(compute_dtype)

    tb, vmem_limit, two_core = _tile_config(
        B, S, H, D, cd.itemsize, jnp.dtype(out_dtype).itemsize, block_b)

    # Sublane / MXU-row alignment: bf16 packs (16,128) per vreg, f32 (8,128);
    # when possible also make TB*S a multiple of 256 (MXU row granularity).
    align = max(8, 32 // cd.itemsize)
    m_al = 256 // math.gcd(S, 256)
    pref = (align * m_al) // math.gcd(align, m_al)

    if B <= tb:
        if two_core and B >= 2 * align:
            # v7x: guarantee >= 2 grid steps so the "parallel" batch axis can
            # actually shard across both TensorCores.
            half = -(-B // 2)
            tb_eff = -(-half // align) * align
        else:
            tb_eff = B                     # single full-batch tile
    else:
        tb_eff = max(align, tb - tb % align)
        if tb_eff >= pref:
            tb_eff -= tb_eff % pref
    b_pad = -(-B // tb_eff) * tb_eff

    # Cast inputs / weights to the compute dtype.  Weights should be pre-cast
    # once via prepare_params(); the casts below are then no-ops.
    xk = _as(x, cd)
    w1 = _as(params["w1"], cd)
    w2 = _as(params["w2"], cd)
    wm = _as(params["wm"], cd)
    b1 = _as(params["b1"], jnp.float32)
    bm = _as(params["bm"], jnp.float32)
    b2s = jnp.reshape(_as(params["b2"], jnp.float32), ())

    # Additive mask with the (scalar) second-linear bias folded in:
    #   valid position  -> +b2      (exact logits, softmax is shift-invariant)
    #   padded position -> b2 - 1e9 (exp underflows to 0, like masked_fill(-1e9))
    mask_bias = b2s - jnp.float32(1e9) * x_mask.astype(jnp.float32)   # (B, S)

    if b_pad != B:
        xk = jnp.pad(xk, ((0, b_pad - B), (0, 0), (0, 0)))
        mask_bias = jnp.pad(mask_bias, ((0, b_pad - B), (0, 0)),
                            constant_values=-1e9)

    # Constant-index weights: single-buffered when the backend supports it.
    wkw = ({"pipeline_mode": pl.Buffered(1)} if _single_buffer_weights_ok()
           else {})

    out = pl.pallas_call(
        att_flatten_kernel,
        out_shape=jax.ShapeDtypeStruct((b_pad, H), out_dtype),
        grid=(b_pad // tb_eff,),
        in_specs=[
            pl.BlockSpec((tb_eff, S, H), lambda b: (b, 0, 0)),   # x tile
            pl.BlockSpec((tb_eff, S), lambda b: (b, 0)),          # mask+b2 bias
            pl.BlockSpec((H, D), lambda b: (0, 0), **wkw),        # mlp.fc.linear W^T
            pl.BlockSpec((1, D), lambda b: (0, 0), **wkw),        # mlp.fc.linear b
            pl.BlockSpec((D, 1), lambda b: (0, 0), **wkw),        # mlp.linear    W^T
            pl.BlockSpec((H, H), lambda b: (0, 0), **wkw),        # linear_merge  W^T
            pl.BlockSpec((1, H), lambda b: (0, 0), **wkw),        # linear_merge  b
        ],
        out_specs=pl.BlockSpec((tb_eff, H), lambda b: (b, 0)),    # lane-dense 2-D out
        compiler_params=pltpu.CompilerParams(
            dimension_semantics=("parallel",),
            vmem_limit_bytes=vmem_limit),
    )(xk, mask_bias, w1, b1, w2, wm, bm)
    return out[:B] if b_pad != B else out


# ---------------------------------------------------------------------------
# Reference & test harness
# ---------------------------------------------------------------------------
def att_flatten_reference(x, x_mask, params, *, flat_glimpses=1):
    """Pure-JAX f32 reference matching the PyTorch forward (eval mode)."""
    h = jnp.maximum(x @ params["w1"] + params["b1"], 0.0)
    att = h @ params["w2"] + params["b2"]                      # (B, S, G)
    att = jnp.where(x_mask[:, :, None], -1000000000.0, att)
    att = jax.nn.softmax(att, axis=1)
    pooled = [jnp.sum(att[:, :, i:i + 1] * x, axis=1) for i in range(flat_glimpses)]
    x_atted = jnp.concatenate(pooled, axis=1)
    return x_atted @ params["wm"] + params["bm"]


def init_params(key, hidden_size, d_inner, flat_glimpses):
    k1, k2, k3, k4, k5, k6 = jax.random.split(key, 6)
    s1 = 1.0 / jnp.sqrt(hidden_size)
    s2 = 1.0 / jnp.sqrt(d_inner)
    return {
        # stored as (in, out) == torch weight transposed
        "w1": jax.random.uniform(k1, (hidden_size, d_inner), jnp.float32, -s1, s1),
        "b1": jax.random.uniform(k2, (1, d_inner), jnp.float32, -s1, s1),
        "w2": jax.random.uniform(k3, (d_inner, flat_glimpses), jnp.float32, -s2, s2),
        "b2": jax.random.uniform(k4, (1, flat_glimpses), jnp.float32, -s2, s2),
        "wm": jax.random.uniform(k5, (flat_glimpses * hidden_size, hidden_size),
                                 jnp.float32, -s1, s1),
        "bm": jax.random.uniform(k6, (1, hidden_size), jnp.float32, -s1, s1),
    }


if __name__ == "__main__":
    B, S, H, D = 2, 8, 32, 64
    FLAT_GLIMPSES = 1  # mlp out_size == 1 in the module, so flat_glimpses must be 1

    key = jax.random.PRNGKey(0)
    kx, kp = jax.random.split(key)
    x = jax.random.normal(kx, (B, S, H), dtype=jnp.float32)
    pos = jnp.arange(S)[None, :]
    lens = jnp.array([S, S - 3])[:, None]
    x_mask = pos >= lens                               # (B, S) bool, True = padded
    params = init_params(kp, H, D, FLAT_GLIMPSES)

    ref = att_flatten_reference(x, x_mask, params, flat_glimpses=FLAT_GLIMPSES)

    # f32 compute path (approx reciprocal in the softmax -> slightly loose tol).
    out_f32 = att_flatten(x, x_mask, prepare_params(params, jnp.float32),
                          flat_glimpses=FLAT_GLIMPSES, compute_dtype=jnp.float32)
    out_f32 = jax.block_until_ready(out_f32)
    assert out_f32.shape == (B, H)
    assert jnp.allclose(out_f32, ref, atol=5e-3, rtol=5e-3), \
        f"f32 mismatch: max abs err {jnp.max(jnp.abs(out_f32 - ref))}"

    # default bf16-matmul path (f32 accumulate/softmax), weights pre-cast once.
    bf16_params = prepare_params(params, jnp.bfloat16)
    out_bf16 = jax.block_until_ready(
        att_flatten(x, x_mask, bf16_params, flat_glimpses=FLAT_GLIMPSES))
    assert out_bf16.shape == (B, H)
    assert jnp.allclose(out_bf16, ref, atol=3e-2, rtol=3e-2), \
        f"bf16 mismatch: max abs err {jnp.max(jnp.abs(out_bf16 - ref))}"

    # Coverage: multi-tile grid (forced block_b), batch padding, longer sequence.
    B2, S2 = 18, 128
    kx2, km2 = jax.random.split(jax.random.PRNGKey(1))
    x2 = jax.random.normal(kx2, (B2, S2, H), dtype=jnp.float32)
    lens2 = jax.random.randint(km2, (B2, 1), 1, S2 + 1)
    mask2 = jnp.arange(S2)[None, :] >= lens2
    ref2 = att_flatten_reference(x2, mask2, params, flat_glimpses=FLAT_GLIMPSES)
    out2 = att_flatten(x2, mask2, prepare_params(params, jnp.float32),
                       flat_glimpses=FLAT_GLIMPSES, compute_dtype=jnp.float32,
                       block_b=8)
    out2 = jax.block_until_ready(out2)
    assert out2.shape == (B2, H)
    assert jnp.allclose(out2, ref2, atol=5e-3, rtol=5e-3), \
        f"multi-tile mismatch: max abs err {jnp.max(jnp.abs(out2 - ref2))}"

    print("KERNEL_OK")
</pallas_src>

<mosaic_0001>
module attributes {stable_mosaic.version = 11 : i64} {
  func.func @_copy(%arg0: i32, %arg1: memref<8x128xf32, #tpu.memory_space<vmem>>, %arg2: memref<8x128xf32, #tpu.memory_space<vmem>>) attributes {dimension_semantics = [#tpu.dimension_semantics<arbitrary>], iteration_bounds = array<i64: 2>, scalar_prefetch = 0 : i64, scratch_operands = 0 : i64, tpu.core_type = #tpu.core_type<tc>, window_params = [{pipeline_mode = #tpu.pipeline_mode<synchronous>, transform_indices = @transform_0, window_bounds = array<i64: 8, 128>}, {transform_indices = @transform_1, window_bounds = array<i64: 8, 128>}]} {
    %c0 = arith.constant 0 : index
    %c0_0 = arith.constant 0 : index
    %0 = vector.load %arg1[%c0, %c0_0] : memref<8x128xf32, #tpu.memory_space<vmem>>, vector<8x128xf32>
    %c0_1 = arith.constant 0 : index
    %c0_2 = arith.constant 0 : index
    %1 = vector.load %arg2[%c0_1, %c0_2] : memref<8x128xf32, #tpu.memory_space<vmem>>, vector<8x128xf32>
    tpu.vector_store %arg2[%c0_1, %c0_2], %0 {strides = array<i32>} : memref<8x128xf32, #tpu.memory_space<vmem>>, vector<8x128xf32>,
    return
  }
  func.func @transform_0(%arg0: i32) -> (i32, i32) {
    %c0_i32 = arith.constant 0 : i32
    %c0_i32_0 = arith.constant 0 : i32
    %c0_i32_1 = arith.constant 0 : i32
    return %c0_i32, %c0_i32_0 : i32, i32
  }
  func.func @transform_1(%arg0: i32) -> (i32, i32) {
    %c0_i32 = arith.constant 0 : i32
    %c0_i32_0 = arith.constant 0 : i32
    return %arg0, %c0_i32 : i32, i32
  }
}

module attributes {stable_mosaic.version = 11 : i64} {
  func.func @att_flatten_kernel(%arg0: i32, %arg1: memref<2x8x32xf32, #tpu.memory_space<vmem>>, %arg2: memref<2x8xf32, #tpu.memory_space<vmem>>, %arg3: memref<32x64xf32, #tpu.memory_space<vmem>>, %arg4: memref<1x64xf32, #tpu.memory_space<vmem>>, %arg5: memref<64x1xf32, #tpu.memory_space<vmem>>, %arg6: memref<32x32xf32, #tpu.memory_space<vmem>>, %arg7: memref<1x32xf32, #tpu.memory_space<vmem>>, %arg8: memref<2x32xf32, #tpu.memory_space<vmem>>) attributes {dimension_semantics = [#tpu.dimension_semantics<parallel>], iteration_bounds = array<i64: 1>, scalar_prefetch = 0 : i64, scratch_operands = 0 : i64, tpu.core_type = #tpu.core_type<tc>, window_params = [{transform_indices = @transform_0, window_bounds = array<i64: 2, 8, 32>}, {transform_indices = @transform_1, window_bounds = array<i64: 2, 8>}, {pipeline_mode = #tpu.pipeline_mode<synchronous>, transform_indices = @transform_2, window_bounds = array<i64: 32, 64>}, {pipeline_mode = #tpu.pipeline_mode<synchronous>, transform_indices = @transform_3, window_bounds = array<i64: 1, 64>}, {pipeline_mode = #tpu.pipeline_mode<synchronous>, transform_indices = @transform_4, window_bounds = array<i64: 64, 1>}, {pipeline_mode = #tpu.pipeline_mode<synchronous>, transform_indices = @transform_5, window_bounds = array<i64: 32, 32>}, {pipeline_mode = #tpu.pipeline_mode<synchronous>, transform_indices = @transform_6, window_bounds = array<i64: 1, 32>}, {transform_indices = @transform_7, window_bounds = array<i64: 2, 32>}]} {
    %c0 = arith.constant 0 : index
    %c0_0 = arith.constant 0 : index
    %c0_1 = arith.constant 0 : index
    %0 = vector.load %arg1[%c0, %c0_0, %c0_1] : memref<2x8x32xf32, #tpu.memory_space<vmem>>, vector<2x8x32xf32>
    %c0_2 = arith.constant 0 : index
    %c0_3 = arith.constant 0 : index
    %1 = vector.load %arg2[%c0_2, %c0_3] : memref<2x8xf32, #tpu.memory_space<vmem>>, vector<2x8xf32>
    %2 = vector.shape_cast %0 : vector<2x8x32xf32> to vector<16x32xf32>
    %c0_4 = arith.constant 0 : index
    %c0_5 = arith.constant 0 : index
    %3 = vector.load %arg3[%c0_4, %c0_5] : memref<32x64xf32, #tpu.memory_space<vmem>>, vector<32x64xf32>
    %cst = arith.constant dense<0.000000e+00> : vector<16x64xf32>
    %4 = tpu.matmul %2, %3, %cst {dimension_numbers = #tpu.dot_dimension_numbers<[1], [0], [0], [1], [0, 0, 1, 1], [], []>} : vector<16x32xf32>, vector<32x64xf32>, vector<16x64xf32> -> vector<16x64xf32>
    %c0_6 = arith.constant 0 : index
    %c0_7 = arith.constant 0 : index
    %5 = vector.load %arg4[%c0_6, %c0_7] : memref<1x64xf32, #tpu.memory_space<vmem>>, vector<1x64xf32>
    %6 = vector.broadcast %5 : vector<1x64xf32> to vector<16x64xf32>
    %7 = arith.addf %4, %6 : vector<16x64xf32>
    %cst_8 = arith.constant 0.000000e+00 : f32
    %8 = vector.broadcast %cst_8 : f32 to vector<16x64xf32>
    %9 = arith.maximumf %7, %8 : vector<16x64xf32>
    %c0_9 = arith.constant 0 : index
    %c0_10 = arith.constant 0 : index
    %10 = vector.load %arg5[%c0_9, %c0_10] : memref<64x1xf32, #tpu.memory_space<vmem>>, vector<64x1xf32>
    %cst_11 = arith.constant dense<0.000000e+00> : vector<16x1xf32>
    %11 = tpu.matmul %9, %10, %cst_11 {dimension_numbers = #tpu.dot_dimension_numbers<[1], [0], [0], [1], [0, 0, 1, 1], [], []>} : vector<16x64xf32>, vector<64x1xf32>, vector<16x1xf32> -> vector<16x1xf32>
    %12 = vector.shape_cast %11 : vector<16x1xf32> to vector<2x8x1xf32>
    %13 = vector.shape_cast %12 : vector<2x8x1xf32> to vector<2x8xf32>
    %14 = arith.addf %13, %1 : vector<2x8xf32>
    %cst_12 = arith.constant dense<0xFF800000> : vector<2xf32>
    %15 = vector.multi_reduction <maximumf>, %14, %cst_12 [1] : vector<2x8xf32> to vector<2xf32>
    %16 = vector.shape_cast %15 : vector<2xf32> to vector<2x1xf32>
    %17 = vector.broadcast %16 : vector<2x1xf32> to vector<2x8xf32>
    %18 = arith.subf %14, %17 : vector<2x8xf32>
    %19 = math.exp %18 : vector<2x8xf32>
    %cst_13 = arith.constant dense<0.000000e+00> : vector<2xf32>
    %20 = vector.multi_reduction <add>, %19, %cst_13 [1] : vector<2x8xf32> to vector<2xf32>
    %21 = vector.shape_cast %20 : vector<2xf32> to vector<2x1xf32>
    %22 = tpu.reciprocal %21 {approx = true} : vector<2x1xf32> -> vector<2x1xf32>
    %23 = vector.broadcast %22 : vector<2x1xf32> to vector<2x8xf32>
    %24 = arith.mulf %19, %23 : vector<2x8xf32>
    %25 = vector.shape_cast %24 : vector<2x8xf32> to vector<2x1x8xf32>
    "tpu.trace_start"() <{level = 10 : i32, message = "tgs,tsh->tgh"}> : () -> ()
    %cst_14 = arith.constant dense<0.000000e+00> : vector<2x1x32xf32>
    %26 = tpu.matmul %25, %0, %cst_14 {dimension_numbers = #tpu.dot_dimension_numbers<[2], [1], [1], [2], [0, 0, 0, 1, 1, 2], [0], [0]>} : vector<2x1x8xf32>, vector<2x8x32xf32>, vector<2x1x32xf32> -> vector<2x1x32xf32>
    "tpu.trace_stop"() : () -> ()
    %27 = vector.shape_cast %26 : vector<2x1x32xf32> to vector<2x32xf32>
    %c0_15 = arith.constant 0 : index
    %c0_16 = arith.constant 0 : index
    %28 = vector.load %arg6[%c0_15, %c0_16] : memref<32x32xf32, #tpu.memory_space<vmem>>, vector<32x32xf32>
    %cst_17 = arith.constant dense<0.000000e+00> : vector<2x32xf32>
    %29 = tpu.matmul %27, %28, %cst_17 {dimension_numbers = #tpu.dot_dimension_numbers<[1], [0], [0], [1], [0, 0, 1, 1], [], []>} : vector<2x32xf32>, vector<32x32xf32>, vector<2x32xf32> -> vector<2x32xf32>
    %c0_18 = arith.constant 0 : index
    %c0_19 = arith.constant 0 : index
    %30 = vector.load %arg7[%c0_18, %c0_19] : memref<1x32xf32, #tpu.memory_space<vmem>>, vector<1x32xf32>
    %31 = vector.broadcast %30 : vector<1x32xf32> to vector<2x32xf32>
    %32 = arith.addf %29, %31 : vector<2x32xf32>
    %c0_20 = arith.constant 0 : index
    %c0_21 = arith.constant 0 : index
    %33 = vector.load %arg8[%c0_20, %c0_21] : memref<2x32xf32, #tpu.memory_space<vmem>>, vector<2x32xf32>
    tpu.vector_store %arg8[%c0_20, %c0_21], %32 {strides = array<i32>} : memref<2x32xf32, #tpu.memory_space<vmem>>, vector<2x32xf32>,
    return
  }
  func.func @transform_0(%arg0: i32) -> (i32, i32, i32) {
    %c0_i32 = arith.constant 0 : i32
    %c0_i32_0 = arith.constant 0 : i32
    %c0_i32_1 = arith.constant 0 : i32
    return %arg0, %c0_i32, %c0_i32_0 : i32, i32, i32
  }
  func.func @transform_1(%arg0: i32) -> (i32, i32) {
    %c0_i32 = arith.constant 0 : i32
    %c0_i32_0 = arith.constant 0 : i32
    return %arg0, %c0_i32 : i32, i32
  }
  func.func @transform_2(%arg0: i32) -> (i32, i32) {
    %c0_i32 = arith.constant 0 : i32
    %c0_i32_0 = arith.constant 0 : i32
    %c0_i32_1 = arith.constant 0 : i32
    return %c0_i32, %c0_i32_0 : i32, i32
  }
  func.func @transform_3(%arg0: i32) -> (i32, i32) {
    %c0_i32 = arith.constant 0 : i32
    %c0_i32_0 = arith.constant 0 : i32
    %c0_i32_1 = arith.constant 0 : i32
    return %c0_i32, %c0_i32_0 : i32, i32
  }
  func.func @transform_4(%arg0: i32) -> (i32, i32) {
    %c0_i32 = arith.constant 0 : i32
    %c0_i32_0 = arith.constant 0 : i32
    %c0_i32_1 = arith.constant 0 : i32
    return %c0_i32, %c0_i32_0 : i32, i32
  }
  func.func @transform_5(%arg0: i32) -> (i32, i32) {
    %c0_i32 = arith.constant 0 : i32
    %c0_i32_0 = arith.constant 0 : i32
    %c0_i32_1 = arith.constant 0 : i32
    return %c0_i32, %c0_i32_0 : i32, i32
  }
  func.func @transform_6(%arg0: i32) -> (i32, i32) {
    %c0_i32 = arith.constant 0 : i32
    %c0_i32_0 = arith.constant 0 : i32
    %c0_i32_1 = arith.constant 0 : i32
    return %c0_i32, %c0_i32_0 : i32, i32
  }
  func.func @transform_7(%arg0: i32) -> (i32, i32) {
    %c0_i32 = arith.constant 0 : i32
    %c0_i32_0 = arith.constant 0 : i32
    return %arg0, %c0_i32 : i32, i32
  }
}

</mosaic_0001>

<llo_original>
// kernel: tpu_custom_call.1
$region0: #{tpu_custom_call.1}
  #allocation0 [shape = 'u32[]', space=smem, size = 0x4, offset = 0x4, fixed_abs, tag = 'smem constant byte address 0x4 - core index']
  #allocation1 [shape = 'u32[144,128]{1,0:T(1,128)}', space=vmem, size = 0x12000, scoped, tag = 'internal scratch']
  %s0 = inlined_call_operand.hbm [shape: f32[8,128], index: 0, kind: input, shape index: {}]
  %s1 = inlined_call_operand.hbm [shape: f32[16,128], index: 1, kind: output, shape index: {}]
  %s2 = sld [smem:[#allocation0]]
  $region41: #{tpu_custom_call.1} parent=0
    _
  %s4 = ssub.s32 1, %s2
  %s5 = scalar_select 0, %s4, %s2
  $region1: #{tpu_custom_call.1} parent=0
    #allocation2 [shape = 'u8[4096]{0}', space=vmem, size = 0x1000, scoped, tag = 'input window, operand 0, single buffered']
    #allocation3 [shape = 's32[2]{0}', space=sflag, size = 0x8, scoped, tag = 'scoped memory for tpu_custom_call.1']
    #allocation4 [shape = 's32[2]{0}', space=sflag, size = 0x8, scoped, tag = 'scoped memory for tpu_custom_call.1']
    #allocation5 [shape = 'u8[8192]{0}', space=vmem, size = 0x2000, scoped, tag = 'output window, operand 0']
    %6 = vsyncpa [#allocation3], 0
    %7 = vsyncpa [#allocation4], 0
    %s8 = scalar_lea.sflag [#allocation4], 1
    %9 = vsyncpa %s8, 0
    loop: start=0, step=1, limit=4
    $region2: #{tpu_custom_call.1} parent=1 // loop_pre_header
      _
    $region3: #{tpu_custom_call.1} parent=1 // loop_header
      %s11 = sphi 0, %s15
      %p12 = scmp.ge.s32.totalorder %s11, 4
      %s19 = sphi 0, %s19
      %s21 = sphi 0, %s19
      %s22 = sphi 0, %s21
      %s36 = sphi 0, %s22
      %s42 = sphi 0, %s44
      %s45 = sphi 0, %s42
      %s46 = sphi 0, %s45
      %s62 = sphi 0, %s46
    $region4: #{tpu_custom_call.1} parent=1 // loop_header_branch
      %14 = sbr.rel (%p12) target = $region8
    $region5: #{tpu_custom_call.1} parent=1 // loop_body
      %s16 = ssub.s32 %s11, 1
      %s17 = ssub.s32 %s11, 2
      %s18 = sadd.s32 %s11, 1
      %s20 = sadd.s32 %s19, 1
      %p23 = scmp.eq.s32.totalorder %s11, 1
      %p24 = scmp.ne.s32.totalorder %s19, %s21
      %p25 = scmp.eq.s32.totalorder %s11, 0
      %p26 = por %p24, %p25
      %p27 = scmp.ne.s32.totalorder %s19, %s21
      %p28 = scmp.eq.s32.totalorder %s16, 1
      %p29 = por %p27, %p28
      %p30 = scmp.ne.s32.totalorder %s21, %s22
      %p31 = scmp.eq.s32.totalorder %s16, 0
      %p32 = por %p30, %p31
      %p33 = scmp.ne.s32.totalorder %s21, %s22
      %p34 = scmp.eq.s32.totalorder %s17, 1
      %p35 = por %p33, %p34
      %p37 = scmp.ne.s32.totalorder %s22, %s36
      %p38 = scmp.eq.s32.totalorder %s17, 0
      %p39 = por %p37, %p38
      %s40 = ssub.s32 %s11, %s18
      %p41 = scmp.eq.s32.totalorder %s40, 0
      %s43 = sadd.s32 %s42, 1
      %s44 = scalar_select %p41, %s42, %s43
      %p47 = pneg %p41
      %p48 = scmp.eq.s32.totalorder %s11, 1
      %p49 = por %p47, %p48
      %p50 = scmp.ne.s32.totalorder %s42, %s45
      %p51 = scmp.eq.s32.totalorder %s11, 0
      %p52 = por %p50, %p51
      %p53 = scmp.ne.s32.totalorder %s42, %s45
      %p54 = scmp.eq.s32.totalorder %s16, 1
      %p55 = por %p53, %p54
      %p56 = scmp.ne.s32.totalorder %s45, %s46
      %p57 = scmp.eq.s32.totalorder %s16, 0
      %p58 = por %p56, %p57
      %p59 = scmp.ne.s32.totalorder %s45, %s46
      %p60 = scmp.eq.s32.totalorder %s17, 1
      %p61 = por %p59, %p60
      %p63 = scmp.ne.s32.totalorder %s46, %s62
      %p64 = scmp.eq.s32.totalorder %s17, 0
      %p65 = por %p63, %p64
      %p66 = scmp.le.s32.totalorder 1, %s11
      %p67 = scmp.lt.s32.totalorder %s11, 3
      %p68 = pnand %p66, %p67
      %p69 = pneg %p68
      // Predicated region
      $region9: #{tpu_custom_call.1} parent=5 // pred_check
        _
      $region10: #{tpu_custom_call.1} parent=5 // pred_check_branch
        %71 = sbr.rel (%p68) target = $region12
      $region11: #{tpu_custom_call.1} parent=5 // pred_region
        %s72 = ssub.s32 %s11, 1
        // Predicated region
        $region13: #{tpu_custom_call.1} parent=11 // pred_check
          %p73 = pneg %p32
        $region14: #{tpu_custom_call.1} parent=11 // pred_check_branch
          %75 = sbr.rel (%p73) target = $region16
        $region15: #{tpu_custom_call.1} parent=11 // pred_region
          %s77 = ssub.s32 128, 128
          %78 = vsyncadd [#allocation3], %s77
          %s80 = sshll.u32 [#allocation2], 4
          %s81 = int_to_ptr.vmem [resolvable:$true] %s80
          %83 = dma.hbm_to_vmem [thread:$0]  %s0, 128, %s81, [#allocation3]
        $region16: #{tpu_custom_call.1} parent=11 // pred_fallthru
          _
      $region12: #{tpu_custom_call.1} parent=5 // pred_fallthru
        _
      %p84 = scmp.lt.s32.totalorder %s11, 2
      // Predicated region
      $region17: #{tpu_custom_call.1} parent=5 // pred_check
        %p85 = pneg %p84
      $region18: #{tpu_custom_call.1} parent=5 // pred_check_branch
        %87 = sbr.rel (%p85) target = $region20
      $region19: #{tpu_custom_call.1} parent=5 // pred_region
        _
      $region20: #{tpu_custom_call.1} parent=5 // pred_fallthru
        _
      %p88 = scmp.le.s32.totalorder 1, %s11
      %p89 = scmp.lt.s32.totalorder %s11, 3
      %p90 = pnand %p88, %p89
      %p91 = pneg %p90
      // Predicated region
      $region21: #{tpu_custom_call.1} parent=5 // pred_check
        _
      $region22: #{tpu_custom_call.1} parent=5 // pred_check_branch
        %93 = sbr.rel (%p90) target = $region24
      $region23: #{tpu_custom_call.1} parent=5 // pred_region
        %s94 = ssub.s32 %s11, 1
        // Predicated region
        $region25: #{tpu_custom_call.1} parent=23 // pred_check
          %p95 = pneg %p32
        $region26: #{tpu_custom_call.1} parent=23 // pred_check_branch
          %97 = sbr.rel (%p95) target = $region28
        $region27: #{tpu_custom_call.1} parent=23 // pred_region
          %98 = dma.done [#allocation3], 128
        $region28: #{tpu_custom_call.1} parent=23 // pred_fallthru
          _
        %p99 = pneg %p32
        %p100 = pneg %p29
        %p101 = pneg %p58
        %p102 = pneg %p55
        %s103 = sand.u32 %s45, 1
        %s104 = scalar_lea.sflag [#allocation4], %s103
        %s105 = sand.u32 %s45, 1
        %s106 = smul.addr %s105, 8
        %s107 = scalar_lea.vmem [#allocation5], %s106
        %v108 = vld [vmem:[#allocation2] sm:$0xff]
        %109 = vst [vmem:[%s107] sm:$0xff] %v108
        %s110 = sand.u32 %s45, 1
        %s111 = scalar_lea.sflag [#allocation4], %s110
        %s112 = sand.u32 %s45, 1
        %s113 = smul.addr %s112, 8
        %s114 = scalar_lea.vmem [#allocation5], %s113
        // Predicated region
        $region29: #{tpu_custom_call.1} parent=23 // pred_check
          %p115 = pneg %p55
        $region30: #{tpu_custom_call.1} parent=23 // pred_check_branch
          %117 = sbr.rel (%p115) target = $region32
        $region31: #{tpu_custom_call.1} parent=23 // pred_region
          %s119 = ssub.s32 128, 128
          %120 = vsyncadd %s111, %s119
          %s121 = smul.addr %s16, 128
          %s122 = scalar_lea.hbm %s1, %s121
          %s124 = sshll.u32 %s114, 4
          %s125 = int_to_ptr.vmem [resolvable:$true] %s124
          %127 = dma.vmem_to_hbm [thread:$0]  %s125, 128, %s122, %s111
        $region32: #{tpu_custom_call.1} parent=23 // pred_fallthru
          _
      $region24: #{tpu_custom_call.1} parent=5 // pred_fallthru
        _
      %p128 = scmp.le.s32.totalorder 2, %s11
      // Predicated region
      $region33: #{tpu_custom_call.1} parent=5 // pred_check
        %p129 = pneg %p128
      $region34: #{tpu_custom_call.1} parent=5 // pred_check_branch
        %131 = sbr.rel (%p129) target = $region36
      $region35: #{tpu_custom_call.1} parent=5 // pred_region
        %s132 = ssub.s32 %s11, 2
        // Predicated region
        $region37: #{tpu_custom_call.1} parent=35 // pred_check
          %p133 = pneg %p61
        $region38: #{tpu_custom_call.1} parent=35 // pred_check_branch
          %135 = sbr.rel (%p133) target = $region40
        $region39: #{tpu_custom_call.1} parent=35 // pred_region
          %s136 = sand.u32 %s46, 1
          %s137 = scalar_lea.sflag [#allocation4], %s136
          %s138 = sand.u32 %s46, 1
          %s139 = smul.addr %s138, 8
          %s140 = scalar_lea.vmem [#allocation5], %s139
          %141 = dma.done %s137, 128
        $region40: #{tpu_custom_call.1} parent=35 // pred_fallthru
          _
      $region36: #{tpu_custom_call.1} parent=5 // pred_fallthru
        _
    $region6: #{tpu_custom_call.1} parent=1 // loop_footer
      %s15 = sadd.s32 1, %s11
    $region7: #{tpu_custom_call.1} parent=1 // loop_footer_branch
      %10 = sbr.rel target = $region3
    $region8: #{tpu_custom_call.1} parent=1 // loop_exit
      _
    %142 = vsyncpa [#allocation3], 1
    %s143 = scalar_lea.sflag [#allocation3], 1
    %144 = vsyncpa %s143, 1
    %145 = vsyncpa [#allocation4], 1
    %s146 = scalar_lea.sflag [#allocation4], 1
    %147 = vsyncpa %s146, 1

// kernel: tpu_custom_call.1
$region0: #{tpu_custom_call.1}
  #allocation0 [shape = 'u32[]', space=smem, size = 0x4, offset = 0x4, fixed_abs, tag = 'smem constant byte address 0x4 - core index']
  #allocation1 [shape = 'u32[144,128]{1,0:T(1,128)}', space=vmem, size = 0x12000, scoped, tag = 'internal scratch']
  %s0 = inlined_call_operand.hbm [shape: f32[2,8,32], index: 0, kind: input, shape index: {}]
  %s1 = inlined_call_operand.vmem [shape: f32[2,8], index: 1, kind: input, shape index: {}]
  %s2 = inlined_call_operand.vmem [shape: f32[32,64], index: 2, kind: input, shape index: {}]
  %s3 = inlined_call_operand.vmem [shape: f32[1,64], index: 3, kind: input, shape index: {}]
  %s4 = inlined_call_operand.vmem [shape: f32[64,1], index: 4, kind: input, shape index: {}]
  %s5 = inlined_call_operand.vmem [shape: f32[32,32], index: 5, kind: input, shape index: {}]
  %s6 = inlined_call_operand.vmem [shape: f32[1,32], index: 6, kind: input, shape index: {}]
  %s7 = inlined_call_operand.hbm [shape: f32[2,32], index: 7, kind: output, shape index: {}]
  %s8 = sld [smem:[#allocation0]]
  $region42: #{tpu_custom_call.1} parent=0
    _
  %s10 = ssub.s32 1, %s8
  %s11 = scalar_select 0, %s10, %s8
  $region1: #{tpu_custom_call.1} parent=0
    #allocation2 [shape = 'u8[8192]{0}', space=vmem, size = 0x2000, scoped, tag = 'input window, operand 0, single buffered']
    #allocation3 [shape = 's32[1]{0}', space=sflag, size = 0x4, scoped, tag = 'scoped memory for tpu_custom_call.1']
    #allocation4 [shape = 's32[1]{0}', space=sflag, size = 0x4, scoped, tag = 'scoped memory for tpu_custom_call.1']
    #allocation5 [shape = 'u8[1024]{0}', space=vmem, size = 0x400, scoped, tag = 'output window, operand 0, single buffered']
    %12 = vsyncpa [#allocation3], 0
    %13 = vsyncpa [#allocation4], 0
    // Predicated region
    $region2: #{tpu_custom_call.1} parent=1 // pred_check
      _
    $region3: #{tpu_custom_call.1} parent=1 // pred_check_branch
      %15 = sbr.rel (0) target = $region5
    $region4: #{tpu_custom_call.1} parent=1 // pred_region
      %s17 = ssub.s32 256, 256
      %18 = vsyncadd [#allocation3], %s17
      %s19 = sshll.u32 [#allocation2], 4
      %s20 = int_to_ptr.vmem [resolvable:$true] %s19
      %25 = dma.hbm_to_vmem [thread:$0]  %s0, 256, %s20, [#allocation3], 128, 128, 8
    $region5: #{tpu_custom_call.1} parent=1 // pred_fallthru
      _
    // Predicated region
    $region6: #{tpu_custom_call.1} parent=1 // pred_check
      _
    $region7: #{tpu_custom_call.1} parent=1 // pred_check_branch
      %27 = sbr.rel (0) target = $region9
    $region8: #{tpu_custom_call.1} parent=1 // pred_region
      _
    $region9: #{tpu_custom_call.1} parent=1 // pred_fallthru
      _
    // Predicated region
    $region10: #{tpu_custom_call.1} parent=1 // pred_check
      _
    $region11: #{tpu_custom_call.1} parent=1 // pred_check_branch
      %29 = sbr.rel (0) target = $region13
    $region12: #{tpu_custom_call.1} parent=1 // pred_region
      _
    $region13: #{tpu_custom_call.1} parent=1 // pred_fallthru
      _
    // Predicated region
    $region14: #{tpu_custom_call.1} parent=1 // pred_check
      _
    $region15: #{tpu_custom_call.1} parent=1 // pred_check_branch
      %31 = sbr.rel (0) target = $region17
    $region16: #{tpu_custom_call.1} parent=1 // pred_region
      _
    $region17: #{tpu_custom_call.1} parent=1 // pred_fallthru
      _
    // Predicated region
    $region18: #{tpu_custom_call.1} parent=1 // pred_check
      _
    $region19: #{tpu_custom_call.1} parent=1 // pred_check_branch
      %33 = sbr.rel (0) target = $region21
    $region20: #{tpu_custom_call.1} parent=1 // pred_region
      _
    $region21: #{tpu_custom_call.1} parent=1 // pred_fallthru
      _
    // Predicated region
    $region22: #{tpu_custom_call.1} parent=1 // pred_check
      _
    $region23: #{tpu_custom_call.1} parent=1 // pred_check_branch
      %35 = sbr.rel (0) target = $region25
    $region24: #{tpu_custom_call.1} parent=1 // pred_region
      _
    $region25: #{tpu_custom_call.1} parent=1 // pred_fallthru
      _
    // Predicated region
    $region26: #{tpu_custom_call.1} parent=1 // pred_check
      _
    $region27: #{tpu_custom_call.1} parent=1 // pred_check_branch
      %37 = sbr.rel (0) target = $region29
    $region28: #{tpu_custom_call.1} parent=1 // pred_region
      _
    $region29: #{tpu_custom_call.1} parent=1 // pred_fallthru
      _
    // Predicated region
    $region30: #{tpu_custom_call.1} parent=1 // pred_check
      _
    $region31: #{tpu_custom_call.1} parent=1 // pred_check_branch
      %39 = sbr.rel (0) target = $region33
    $region32: #{tpu_custom_call.1} parent=1 // pred_region
      %40 = dma.done [#allocation3], 256
    $region33: #{tpu_custom_call.1} parent=1 // pred_fallthru
      _
    %v41 = vld [vmem:[#allocation2] sm:$0xff]
    %v42 = vld [vmem:[#allocation2 + $0x8] sm:$0xff]
    %v43 = vld [vmem:[%s1] sm:$0x3]
    %v44 = vld [vmem:[%s2] sm:$0xff]
    %v45 = vld [vmem:[%s2 + $0x8] sm:$0xff]
    %v46 = vld [vmem:[%s2 + $0x10] sm:$0xff]
    %v47 = vld [vmem:[%s2 + $0x18] sm:$0xff]
    %v48 = vld [vmem:[%s3] sm:$0x1]
    %v50 = vlaneseq
    %v51 = vshrl.u32 %v50, 7
    %v52 = vsub.s32 0, %v51
    %v53 = vrot.slane %v48, %v52
    %vm55 = vcmask 261120
    %v57 = vsel %vm55, %v41, 0
    %v60 = vsel %vm55, %v42, 0
    %62 = vmatprep.subr.mxu0 0.0
    %63 = vmatpush1.msra.mxu0 %v44
    %64 = vmatprep.subr.mxu0 0.0
    %65 = vmatpush1.msra.mxu0 %v45
    %66 = vmatprep.subr.mxu0 0.0
    %67 = vmatpush1.msra.mxu0 %v46
    %68 = vmatprep.subr.mxu0 0.0
    %69 = vmatpush1.msra.mxu0 %v47
    %70 = vmatprep.subr.mxu0 0.0
    %71 = vmatpush1.msra.mxu0 0.0
    %72 = vmatprep.subr.mxu0 0.0
    %73 = vmatpush1.msra.mxu0 0.0
    %74 = vmatprep.subr.mxu0 0.0
    %75 = vmatpush1.msra.mxu0 0.0
    %76 = vmatprep.subr.mxu0 0.0
    %77 = vmatpush1.msra.mxu0 0.0
    %78 = vmatprep.subr.mxu0 0.0
    %79 = vmatpush1.msra.mxu0 0.0
    %80 = vmatprep.subr.mxu0 0.0
    %81 = vmatpush1.msra.mxu0 0.0
    %82 = vmatprep.subr.mxu0 0.0
    %83 = vmatpush1.msra.mxu0 0.0
    %84 = vmatprep.subr.mxu0 0.0
    %85 = vmatpush1.msra.mxu0 0.0
    %86 = vmatprep.subr.mxu0 0.0
    %87 = vmatpush1.msra.mxu0 0.0
    %88 = vmatprep.subr.mxu0 0.0
    %89 = vmatpush1.msra.mxu0 0.0
    %90 = vmatprep.subr.mxu0 0.0
    %91 = vmatpush1.msra.mxu0 0.0
    %92 = vmatprep.subr.mxu0 0.0
    %93 = vmatpush1.msra.mxu0 0.0
    %94 = vmatprep.subr.mxu0 0.0
    %95 = vmatpush1.msra.mxu0 0.0
    %96 = vmatprep.subr.mxu0 0.0
    %97 = vmatpush1.msra.mxu0 0.0
    %98 = vmatprep.subr.mxu0 0.0
    %99 = vmatpush1.msra.mxu0 0.0
    %100 = vmatprep.subr.mxu0 0.0
    %101 = vmatpush1.msra.mxu0 0.0
    %102 = vmatprep.subr.mxu0 0.0
    %103 = vmatpush1.msra.mxu0 0.0
    %104 = vmatprep.subr.mxu0 0.0
    %105 = vmatpush1.msra.mxu0 0.0
    %106 = vmatprep.subr.mxu0 0.0
    %107 = vmatpush1.msra.mxu0 0.0
    %108 = vmatprep.subr.mxu0 0.0
    %109 = vmatpush1.msra.mxu0 0.0
    %110 = vmatprep.subr.mxu0 0.0
    %111 = vmatpush1.msra.mxu0 0.0
    %112 = vmatprep.subr.mxu0 0.0
    %113 = vmatpush1.msra.mxu0 0.0
    %114 = vmatprep.subr.mxu0 0.0
    %115 = vmatpush1.msra.mxu0 0.0
    %116 = vmatprep.subr.mxu0 0.0
    %117 = vmatpush1.msra.mxu0 0.0
    %118 = vmatprep.subr.mxu0 0.0
    %119 = vmatpush1.msra.mxu0 0.0
    %120 = vmatprep.subr.mxu0 0.0
    %121 = vmatpush1.msra.mxu0 0.0
    %122 = vmatprep.subr.mxu0 0.0
    %123 = vmatpush1.msra.mxu0 0.0
    %124 = vmatprep.subr.mxu0 0.0
    %125 = vmatpush1.msra.mxu0 0.0
    %126 = vmatprep.mubr.f32.mxu0 0.0
    %127 = vmatmul.mubr.f32.gmra.mrb[0].mxu0 %v57
    %v128 = vpop.f32.mrb[0].mxu0
    %v129 = vadd.f32 %v53, %v128
    %v130 = vpop.f32.mrb[0].mxu0
    %131 = vmatprep.mubr.f32.mxu0 0.0
    %132 = vmatmul.mubr.f32.gmra.mrb[0].mxu0 %v60
    %v133 = vpop.f32.mrb[0].mxu0
    %v134 = vadd.f32 %v53, %v133
    %v135 = vpop.f32.mrb[0].mxu0
    %136 = vdwg.mxu0
    %v137 = vmax.f32 %v129, 0.0
    %v138 = vmax.f32 %v134, 0.0
    %v139 = vld [vmem:[%s4] sm:$0xff]
    %v140 = vld [vmem:[%s4 + $0x8] sm:$0xff]
    %v141 = vld [vmem:[%s4 + $0x10] sm:$0xff]
    %v142 = vld [vmem:[%s4 + $0x18] sm:$0xff]
    %v143 = vld [vmem:[%s4 + $0x20] sm:$0xff]
    %v144 = vld [vmem:[%s4 + $0x28] sm:$0xff]
    %v145 = vld [vmem:[%s4 + $0x30] sm:$0xff]
    %v146 = vld [vmem:[%s4 + $0x38] sm:$0xff]
    %vm147 = vcmask 523264
    %v149 = vsel %vm147, %v137, 0
    %v152 = vsel %vm147, %v138, 0
    %154 = vmatprep.subr.mxu0 0.0
    %155 = vmatpush1.msra.mxu0 %v139
    %156 = vmatprep.subr.mxu0 0.0
    %157 = vmatpush1.msra.mxu0 %v140
    %158 = vmatprep.subr.mxu0 0.0
    %159 = vmatpush1.msra.mxu0 %v141
    %160 = vmatprep.subr.mxu0 0.0
    %161 = vmatpush1.msra.mxu0 %v142
    %162 = vmatprep.subr.mxu0 0.0
    %163 = vmatpush1.msra.mxu0 %v143
    %164 = vmatprep.subr.mxu0 0.0
    %165 = vmatpush1.msra.mxu0 %v144
    %166 = vmatprep.subr.mxu0 0.0
    %167 = vmatpush1.msra.mxu0 %v145
    %168 = vmatprep.subr.mxu0 0.0
    %169 = vmatpush1.msra.mxu0 %v146
    %170 = vmatprep.subr.mxu0 0.0
    %171 = vmatpush1.msra.mxu0 0.0
    %172 = vmatprep.subr.mxu0 0.0
    %173 = vmatpush1.msra.mxu0 0.0
    %174 = vmatprep.subr.mxu0 0.0
    %175 = vmatpush1.msra.mxu0 0.0
    %176 = vmatprep.subr.mxu0 0.0
    %177 = vmatpush1.msra.mxu0 0.0
    %178 = vmatprep.subr.mxu0 0.0
    %179 = vmatpush1.msra.mxu0 0.0
    %180 = vmatprep.subr.mxu0 0.0
    %181 = vmatpush1.msra.mxu0 0.0
    %182 = vmatprep.subr.mxu0 0.0
    %183 = vmatpush1.msra.mxu0 0.0
    %184 = vmatprep.subr.mxu0 0.0
    %185 = vmatpush1.msra.mxu0 0.0
    %186 = vmatprep.subr.mxu0 0.0
    %187 = vmatpush1.msra.mxu0 0.0
    %188 = vmatprep.subr.mxu0 0.0
    %189 = vmatpush1.msra.mxu0 0.0
    %190 = vmatprep.subr.mxu0 0.0
    %191 = vmatpush1.msra.mxu0 0.0
    %192 = vmatprep.subr.mxu0 0.0
    %193 = vmatpush1.msra.mxu0 0.0
    %194 = vmatprep.subr.mxu0 0.0
    %195 = vmatpush1.msra.mxu0 0.0
    %196 = vmatprep.subr.mxu0 0.0
    %197 = vmatpush1.msra.mxu0 0.0
    %198 = vmatprep.subr.mxu0 0.0
    %199 = vmatpush1.msra.mxu0 0.0
    %200 = vmatprep.subr.mxu0 0.0
    %201 = vmatpush1.msra.mxu0 0.0
    %202 = vmatprep.subr.mxu0 0.0
    %203 = vmatpush1.msra.mxu0 0.0
    %204 = vmatprep.subr.mxu0 0.0
    %205 = vmatpush1.msra.mxu0 0.0
    %206 = vmatprep.subr.mxu0 0.0
    %207 = vmatpush1.msra.mxu0 0.0
    %208 = vmatprep.subr.mxu0 0.0
    %209 = vmatpush1.msra.mxu0 0.0
    %210 = vmatprep.subr.mxu0 0.0
    %211 = vmatpush1.msra.mxu0 0.0
    %212 = vmatprep.subr.mxu0 0.0
    %213 = vmatpush1.msra.mxu0 0.0
    %214 = vmatprep.subr.mxu0 0.0
    %215 = vmatpush1.msra.mxu0 0.0
    %216 = vmatprep.subr.mxu0 0.0
    %217 = vmatpush1.msra.mxu0 0.0
    %218 = vmatprep.mubr.f32.mxu0 0.0
    %219 = vmatmul.mubr.f32.gmra.mrb[0].mxu0 %v149
    %v220 = vpop.f32.mrb[0].mxu0
    %v221 = vadd.f32 0.0, %v220
    %v222 = vpop.f32.mrb[0].mxu0
    %223 = vmatprep.mubr.f32.mxu0 0.0
    %224 = vmatmul.mubr.f32.gmra.mrb[0].mxu0 %v152
    %v225 = vpop.f32.mrb[0].mxu0
    %v226 = vadd.f32 0.0, %v225
    %v227 = vpop.f32.mrb[0].mxu0
    %228 = vdwg.mxu0
    %v230 = vlaneseq
    %v231 = vshrl.u32 %v230, 7
    %v232 = vsub.s32 0, %v231
    %v233 = vrot.slane %v43, %v232
    %235 = vbcast.lane.b32.xlu0 %v233, 256
    %v236 = vpop.permute.xlu0 %235
    %v237 = vlaneseq
    %v238 = vshrl.u32 %v237, 7
    %v239 = vsub.s32 1, %v238
    %v240 = vrot.slane %v43, %v239
    %242 = vbcast.lane.b32.xlu0 %v240, 256
    %v243 = vpop.permute.xlu0 %242
    %v246 = vadd.f32 %v221, %v236
    %v247 = vadd.f32 %v226, %v243
    %250 = vset.pattern.permute.xlu0 0
    %251 = vperm.xlu0 %250, %v246
    %v252 = vpop.permute.xlu0 %251
    %253 = vset.pattern.permute.xlu0 0
    %254 = vperm.xlu0 %253, %v247
    %v255 = vpop.permute.xlu0 %254
    %v256 = vlaneseq
    %v257 = vand.u32 %v256, 127
    %v258 = vlaneseq
    %v259 = vshrl.u32 %v258, 7
    %v260 = vsub.s32 %v257, %v259
    %v261 = vrot.slane %v252, %v260
    %v262 = vlaneseq
    %v263 = vshrl.u32 %v262, 7
    %v264 = vsub.s32 %v257, %v263
    %v265 = vrot.slane %v255, %v264
    %vm266 = vcmask 1041409
    %v267 = vsel %vm266, %v265, %v261
    %vm269 = vcmask 58368
    %v270 = vsel %vm269, %v267, -inf
    %271 = vmax.xlane.f32.xlu0 %v270
    %v272 = vpop.xlane.xlu0 %271
    %v274 = vlaneseq
    %v275 = vshrl.u32 %v274, 7
    %v276 = vsub.s32 0, %v275
    %v277 = vrot.slane %v272, %v276
    %v278 = vlaneseq
    %v279 = vshrl.u32 %v278, 7
    %v280 = vsub.s32 1, %v279
    %v281 = vrot.slane %v272, %v280
    %v284 = vsub.f32 %v246, %v277
    %v285 = vsub.f32 %v247, %v281
    %v286 = vmul.f32 %v284, 1.442695
    %v287 = vpow.pop %v286
    %v288 = vmul.f32 %v285, 1.442695
    %v289 = vpow.pop %v288
    %292 = vset.pattern.permute.xlu0 0
    %293 = vperm.xlu0 %292, %v287
    %v294 = vpop.permute.xlu0 %293
    %295 = vset.pattern.permute.xlu0 0
    %296 = vperm.xlu0 %295, %v289
    %v297 = vpop.permute.xlu0 %296
    %v298 = vlaneseq
    %v299 = vshrl.u32 %v298, 7
    %v300 = vsub.s32 %v257, %v299
    %v301 = vrot.slane %v294, %v300
    %v302 = vlaneseq
    %v303 = vshrl.u32 %v302, 7
    %v304 = vsub.s32 %v257, %v303
    %v305 = vrot.slane %v297, %v304
    %v306 = vsel %vm266, %v305, %v301
    %v308 = vsel %vm269, %v306, 0.0
    %309 = vadd.xlane.f32.xlu0 %v308
    %v310 = vpop.xlane.xlu0 %309
    %v311 = vrcp.pop %v310
    %v313 = vlaneseq
    %v314 = vshrl.u32 %v313, 7
    %v315 = vsub.s32 0, %v314
    %v316 = vrot.slane %v311, %v315
    %v317 = vlaneseq
    %v318 = vshrl.u32 %v317, 7
    %v319 = vsub.s32 1, %v318
    %v320 = vrot.slane %v311, %v319
    %v323 = vmul.f32 %v287, %v316
    %v324 = vmul.f32 %v289, %v320
    %326 = vset.pattern.permute.xlu0 0
    %327 = vperm.xlu0 %326, %v323
    %v328 = vpop.permute.xlu0 %327
    %v329 = vlaneseq
    %v330 = vshrl.u32 %v329, 7
    %v331 = vsub.s32 %v257, %v330
    %v332 = vrot.slane %v328, %v331
    %vm333 = vcmask 64512
    %v334 = vsel %vm333, %v332, 0
    %336 = vmatprep.subr.mxu0 0.0
    %337 = vmatpush1.msra.mxu0 %v41
    %338 = vmatprep.subr.mxu0 0.0
    %339 = vmatpush1.msra.mxu0 0.0
    %340 = vmatprep.subr.mxu0 0.0
    %341 = vmatpush1.msra.mxu0 0.0
    %342 = vmatprep.subr.mxu0 0.0
    %343 = vmatpush1.msra.mxu0 0.0
    %344 = vmatprep.subr.mxu0 0.0
    %345 = vmatpush1.msra.mxu0 0.0
    %346 = vmatprep.subr.mxu0 0.0
    %347 = vmatpush1.msra.mxu0 0.0
    %348 = vmatprep.subr.mxu0 0.0
    %349 = vmatpush1.msra.mxu0 0.0
    %350 = vmatprep.subr.mxu0 0.0
    %351 = vmatpush1.msra.mxu0 0.0
    %352 = vmatprep.subr.mxu0 0.0
    %353 = vmatpush1.msra.mxu0 0.0
    %354 = vmatprep.subr.mxu0 0.0
    %355 = vmatpush1.msra.mxu0 0.0
    %356 = vmatprep.subr.mxu0 0.0
    %357 = vmatpush1.msra.mxu0 0.0
    %358 = vmatprep.subr.mxu0 0.0
    %359 = vmatpush1.msra.mxu0 0.0
    %360 = vmatprep.subr.mxu0 0.0
    %361 = vmatpush1.msra.mxu0 0.0
    %362 = vmatprep.subr.mxu0 0.0
    %363 = vmatpush1.msra.mxu0 0.0
    %364 = vmatprep.subr.mxu0 0.0
    %365 = vmatpush1.msra.mxu0 0.0
    %366 = vmatprep.subr.mxu0 0.0
    %367 = vmatpush1.msra.mxu0 0.0
    %368 = vmatprep.subr.mxu0 0.0
    %369 = vmatpush1.msra.mxu0 0.0
    %370 = vmatprep.subr.mxu0 0.0
    %371 = vmatpush1.msra.mxu0 0.0
    %372 = vmatprep.subr.mxu0 0.0
    %373 = vmatpush1.msra.mxu0 0.0
    %374 = vmatprep.subr.mxu0 0.0
    %375 = vmatpush1.msra.mxu0 0.0
    %376 = vmatprep.subr.mxu0 0.0
    %377 = vmatpush1.msra.mxu0 0.0
    %378 = vmatprep.subr.mxu0 0.0
    %379 = vmatpush1.msra.mxu0 0.0
    %380 = vmatprep.subr.mxu0 0.0
    %381 = vmatpush1.msra.mxu0 0.0
    %382 = vmatprep.subr.mxu0 0.0
    %383 = vmatpush1.msra.mxu0 0.0
    %384 = vmatprep.subr.mxu0 0.0
    %385 = vmatpush1.msra.mxu0 0.0
    %386 = vmatprep.subr.mxu0 0.0
    %387 = vmatpush1.msra.mxu0 0.0
    %388 = vmatprep.subr.mxu0 0.0
    %389 = vmatpush1.msra.mxu0 0.0
    %390 = vmatprep.subr.mxu0 0.0
    %391 = vmatpush1.msra.mxu0 0.0
    %392 = vmatprep.subr.mxu0 0.0
    %393 = vmatpush1.msra.mxu0 0.0
    %394 = vmatprep.subr.mxu0 0.0
    %395 = vmatpush1.msra.mxu0 0.0
    %396 = vmatprep.subr.mxu0 0.0
    %397 = vmatpush1.msra.mxu0 0.0
    %398 = vmatprep.subr.mxu0 0.0
    %399 = vmatpush1.msra.mxu0 0.0
    %400 = vmatprep.mubr.f32.mxu0 0.0
    %401 = vmatmul.mubr.f32.gmra.mrb[0].mxu0 %v334
    %v402 = vpop.f32.mrb[0].mxu0
    %v403 = vadd.f32 0.0, %v402
    %v404 = vpop.f32.mrb[0].mxu0
    %405 = vdwg.mxu0
    %407 = vset.pattern.permute.xlu0 0
    %408 = vperm.xlu0 %407, %v324
    %v409 = vpop.permute.xlu0 %408
    %v410 = vlaneseq
    %v411 = vshrl.u32 %v410, 7
    %v412 = vsub.s32 %v257, %v411
    %v413 = vrot.slane %v409, %v412
    %v414 = vsel %vm333, %v413, 0
    %416 = vmatprep.subr.mxu0 0.0
    %417 = vmatpush1.msra.mxu0 %v42
    %418 = vmatprep.subr.mxu0 0.0
    %419 = vmatpush1.msra.mxu0 0.0
    %420 = vmatprep.subr.mxu0 0.0
    %421 = vmatpush1.msra.mxu0 0.0
    %422 = vmatprep.subr.mxu0 0.0
    %423 = vmatpush1.msra.mxu0 0.0
    %424 = vmatprep.subr.mxu0 0.0
    %425 = vmatpush1.msra.mxu0 0.0
    %426 = vmatprep.subr.mxu0 0.0
    %427 = vmatpush1.msra.mxu0 0.0
    %428 = vmatprep.subr.mxu0 0.0
    %429 = vmatpush1.msra.mxu0 0.0
    %430 = vmatprep.subr.mxu0 0.0
    %431 = vmatpush1.msra.mxu0 0.0
    %432 = vmatprep.subr.mxu0 0.0
    %433 = vmatpush1.msra.mxu0 0.0
    %434 = vmatprep.subr.mxu0 0.0
    %435 = vmatpush1.msra.mxu0 0.0
    %436 = vmatprep.subr.mxu0 0.0
    %437 = vmatpush1.msra.mxu0 0.0
    %438 = vmatprep.subr.mxu0 0.0
    %439 = vmatpush1.msra.mxu0 0.0
    %440 = vmatprep.subr.mxu0 0.0
    %441 = vmatpush1.msra.mxu0 0.0
    %442 = vmatprep.subr.mxu0 0.0
    %443 = vmatpush1.msra.mxu0 0.0
    %444 = vmatprep.subr.mxu0 0.0
    %445 = vmatpush1.msra.mxu0 0.0
    %446 = vmatprep.subr.mxu0 0.0
    %447 = vmatpush1.msra.mxu0 0.0
    %448 = vmatprep.subr.mxu0 0.0
    %449 = vmatpush1.msra.mxu0 0.0
    %450 = vmatprep.subr.mxu0 0.0
    %451 = vmatpush1.msra.mxu0 0.0
    %452 = vmatprep.subr.mxu0 0.0
    %453 = vmatpush1.msra.mxu0 0.0
    %454 = vmatprep.subr.mxu0 0.0
    %455 = vmatpush1.msra.mxu0 0.0
    %456 = vmatprep.subr.mxu0 0.0
    %457 = vmatpush1.msra.mxu0 0.0
    %458 = vmatprep.subr.mxu0 0.0
    %459 = vmatpush1.msra.mxu0 0.0
    %460 = vmatprep.subr.mxu0 0.0
    %461 = vmatpush1.msra.mxu0 0.0
    %462 = vmatprep.subr.mxu0 0.0
    %463 = vmatpush1.msra.mxu0 0.0
    %464 = vmatprep.subr.mxu0 0.0
    %465 = vmatpush1.msra.mxu0 0.0
    %466 = vmatprep.subr.mxu0 0.0
    %467 = vmatpush1.msra.mxu0 0.0
    %468 = vmatprep.subr.mxu0 0.0
    %469 = vmatpush1.msra.mxu0 0.0
    %470 = vmatprep.subr.mxu0 0.0
    %471 = vmatpush1.msra.mxu0 0.0
    %472 = vmatprep.subr.mxu0 0.0
    %473 = vmatpush1.msra.mxu0 0.0
    %474 = vmatprep.subr.mxu0 0.0
    %475 = vmatpush1.msra.mxu0 0.0
    %476 = vmatprep.subr.mxu0 0.0
    %477 = vmatpush1.msra.mxu0 0.0
    %478 = vmatprep.subr.mxu0 0.0
    %479 = vmatpush1.msra.mxu0 0.0
    %480 = vmatprep.mubr.f32.mxu0 0.0
    %481 = vmatmul.mubr.f32.gmra.mrb[0].mxu0 %v414
    %v482 = vpop.f32.mrb[0].mxu0
    %v483 = vadd.f32 0.0, %v482
    %v484 = vpop.f32.mrb[0].mxu0
    %485 = vdwg.mxu0
    %v486 = vld [vmem:[%s5] sm:$0xff]
    %v487 = vld [vmem:[%s5 + $0x8] sm:$0xff]
    %v488 = vld [vmem:[%s5 + $0x10] sm:$0xff]
    %v489 = vld [vmem:[%s5 + $0x18] sm:$0xff]
    %v490 = vld [vmem:[%s6] sm:$0x1]
    %v492 = vlaneseq
    %v493 = vshrl.u32 %v492, 7
    %v494 = vsub.s32 0, %v493
    %v495 = vrot.slane %v490, %v494
    %v499 = vrot.slane %v483, 7
    %v500 = vsel %vm266, %v499, %v403
    %v501 = vsel %vm55, %v500, 0
    %503 = vmatprep.subr.mxu0 0.0
    %504 = vmatpush1.msra.mxu0 %v486
    %505 = vmatprep.subr.mxu0 0.0
    %506 = vmatpush1.msra.mxu0 %v487
    %507 = vmatprep.subr.mxu0 0.0
    %508 = vmatpush1.msra.mxu0 %v488
    %509 = vmatprep.subr.mxu0 0.0
    %510 = vmatpush1.msra.mxu0 %v489
    %511 = vmatprep.subr.mxu0 0.0
    %512 = vmatpush1.msra.mxu0 0.0
    %513 = vmatprep.subr.mxu0 0.0
    %514 = vmatpush1.msra.mxu0 0.0
    %515 = vmatprep.subr.mxu0 0.0
    %516 = vmatpush1.msra.mxu0 0.0
    %517 = vmatprep.subr.mxu0 0.0
    %518 = vmatpush1.msra.mxu0 0.0
    %519 = vmatprep.subr.mxu0 0.0
    %520 = vmatpush1.msra.mxu0 0.0
    %521 = vmatprep.subr.mxu0 0.0
    %522 = vmatpush1.msra.mxu0 0.0
    %523 = vmatprep.subr.mxu0 0.0
    %524 = vmatpush1.msra.mxu0 0.0
    %525 = vmatprep.subr.mxu0 0.0
    %526 = vmatpush1.msra.mxu0 0.0
    %527 = vmatprep.subr.mxu0 0.0
    %528 = vmatpush1.msra.mxu0 0.0
    %529 = vmatprep.subr.mxu0 0.0
    %530 = vmatpush1.msra.mxu0 0.0
    %531 = vmatprep.subr.mxu0 0.0
    %532 = vmatpush1.msra.mxu0 0.0
    %533 = vmatprep.subr.mxu0 0.0
    %534 = vmatpush1.msra.mxu0 0.0
    %535 = vmatprep.subr.mxu0 0.0
    %536 = vmatpush1.msra.mxu0 0.0
    %537 = vmatprep.subr.mxu0 0.0
    %538 = vmatpush1.msra.mxu0 0.0
    %539 = vmatprep.subr.mxu0 0.0
    %540 = vmatpush1.msra.mxu0 0.0
    %541 = vmatprep.subr.mxu0 0.0
    %542 = vmatpush1.msra.mxu0 0.0
    %543 = vmatprep.subr.mxu0 0.0
    %544 = vmatpush1.msra.mxu0 0.0
    %545 = vmatprep.subr.mxu0 0.0
    %546 = vmatpush1.msra.mxu0 0.0
    %547 = vmatprep.subr.mxu0 0.0
    %548 = vmatpush1.msra.mxu0 0.0
    %549 = vmatprep.subr.mxu0 0.0
    %550 = vmatpush1.msra.mxu0 0.0
    %551 = vmatprep.subr.mxu0 0.0
    %552 = vmatpush1.msra.mxu0 0.0
    %553 = vmatprep.subr.mxu0 0.0
    %554 = vmatpush1.msra.mxu0 0.0
    %555 = vmatprep.subr.mxu0 0.0
    %556 = vmatpush1.msra.mxu0 0.0
    %557 = vmatprep.subr.mxu0 0.0
    %558 = vmatpush1.msra.mxu0 0.0
    %559 = vmatprep.subr.mxu0 0.0
    %560 = vmatpush1.msra.mxu0 0.0
    %561 = vmatprep.subr.mxu0 0.0
    %562 = vmatpush1.msra.mxu0 0.0
    %563 = vmatprep.subr.mxu0 0.0
    %564 = vmatpush1.msra.mxu0 0.0
    %565 = vmatprep.subr.mxu0 0.0
    %566 = vmatpush1.msra.mxu0 0.0
    %567 = vmatprep.mubr.f32.mxu0 0.0
    %568 = vmatmul.mubr.f32.gmra.mrb[0].mxu0 %v501
    %v569 = vpop.f32.mrb[0].mxu0
    %v570 = vadd.f32 %v495, %v569
    %v571 = vpop.f32.mrb[0].mxu0
    %572 = vdwg.mxu0
    %vm573 = vcmask 254976
    %574 = vst.msk [vmem:[#allocation5] sm:$0x3] %vm573, %v570
    // Predicated region
    $region34: #{tpu_custom_call.1} parent=1 // pred_check
      _
    $region35: #{tpu_custom_call.1} parent=1 // pred_check_branch
      %576 = sbr.rel (0) target = $region37
    $region36: #{tpu_custom_call.1} parent=1 // pred_region
      %s578 = ssub.s32 32, 32
      %579 = vsyncadd [#allocation4], %s578
      %s581 = sshll.u32 [#allocation5], 4
      %s582 = int_to_ptr.vmem [resolvable:$true] %s581
      %584 = dma.vmem_to_hbm [thread:$0]  %s582, 32, %s7, [#allocation4]
    $region37: #{tpu_custom_call.1} parent=1 // pred_fallthru
      _
    // Predicated region
    $region38: #{tpu_custom_call.1} parent=1 // pred_check
      _
    $region39: #{tpu_custom_call.1} parent=1 // pred_check_branch
      %586 = sbr.rel (0) target = $region41
    $region40: #{tpu_custom_call.1} parent=1 // pred_region
      %587 = dma.done [#allocation4], 32
    $region41: #{tpu_custom_call.1} parent=1 // pred_fallthru
      _
    %588 = vsyncpa [#allocation3], 1
    %589 = vsyncpa [#allocation4], 1

</llo_original>
